<compile_context>
chip_gen: v5e
topology: v5e:2x2
jax: 0.10.0
libtpu: 0.0.40
codegen_flags: <defaults>
</compile_context>

<pallas_src>
import functools
import math

import jax
import jax.numpy as jnp
from jax import lax
from jax.experimental import pallas as pl
from jax.experimental.pallas import tpu as pltpu


# --------------------------------------------------------------------------
# Kernel A: K / V projections, emitted head-major / pre-transposed.
#   Outputs (B, Dv, Skv) bf16; only one small 2-D transpose per input tile.
# --------------------------------------------------------------------------
def kv_proj_kernel(key_ref, value_ref, wkT_ref, bkT_ref, wvT_ref, bvT_ref,
                   kT_ref, vT_ref):
    keyT = key_ref[0].T.astype(jnp.bfloat16)        # (Dk,  tkv)
    valT = value_ref[0].T.astype(jnp.bfloat16)      # (Dvin, tkv)
    kT = jnp.dot(wkT_ref[...], keyT,
                 preferred_element_type=jnp.float32) + bkT_ref[...]   # (Dv, tkv)
    vT = jnp.dot(wvT_ref[...], valT,
                 preferred_element_type=jnp.float32) + bvT_ref[...]   # (Dv, tkv)
    kT_ref[0] = kT.astype(kT_ref.dtype)
    vT_ref[0] = vT.astype(vT_ref.dtype)


# --------------------------------------------------------------------------
# Kernel B: per-(batch, q-tile, head) Q projection + attention + accumulated
# output projection.  Grid = (B, Sq//tq, H), heads innermost ("arbitrary").
# --------------------------------------------------------------------------
def mha_attn_kernel(scale, q_in_ref, kt_ref, vt_ref,
                    wq_ref, bq_ref, wo_ref, bo_ref,
                    out_ref, attn_ref, acc_ref):
    h = pl.program_id(2)
    last_h = pl.num_programs(2) - 1

    # Per-head query projection; fold 1/sqrt(dh) into q so the (tq, Skv)
    # logits need no extra VPU multiply.
    xq = q_in_ref[0].astype(jnp.bfloat16)                       # (tq, Dq)
    q = jnp.dot(xq, wq_ref[0], preferred_element_type=jnp.float32)
    q = (q + bq_ref[0]) * scale                                 # (tq, dh) f32

    kt = kt_ref[0]                                              # (dh, Skv) bf16
    vt = vt_ref[0]                                              # (dh, Skv) bf16

    # Logits and softmax statistics (f32; casts only at MXU boundaries).
    logits = jnp.dot(q.astype(jnp.bfloat16), kt,
                     preferred_element_type=jnp.float32)        # (tq, Skv)
    m = jnp.max(logits, axis=-1, keepdims=True)
    p = jnp.exp(logits - m)                                     # un-normalized
    denom = jnp.sum(p, axis=-1, keepdims=True)

    # PV matmul with the UN-normalized probabilities (overlaps with the
    # row-sum); normalize the small (tq, dh) result afterwards.
    att_un = lax.dot_general(p.astype(jnp.bfloat16), vt,
                             (((1,), (1,)), ((), ())),
                             preferred_element_type=jnp.float32)  # (tq, dh)

    inv = 1.0 / denom                                           # exact; (tq,1) only
    attn_ref[0, 0] = (p * inv).astype(attn_ref.dtype)           # normalized weights
    att = (att_un * inv).astype(jnp.bfloat16)                   # (tq, dh)

    # Head-concat + output projection as an MXU accumulation over the h axis.
    @pl.when(h == 0)
    def _():
        acc_ref[...] = jnp.zeros_like(acc_ref)

    acc_ref[...] += jnp.dot(att, wo_ref[0], preferred_element_type=jnp.float32)

    @pl.when(h == last_h)
    def _():
        out_ref[0] = (acc_ref[...] + bo_ref[...]).astype(out_ref.dtype)


# --------------------------------------------------------------------------
# Wrapper helpers
# --------------------------------------------------------------------------
def _pick_tile(total, requested, granule):
    """Largest divisor of `total` that is <= requested and a multiple of
    `granule`; falls back to the full extent (always a legal block)."""
    t = min(requested, total)
    for cand in range(t, 0, -1):
        if total % cand == 0 and cand % granule == 0:
            return cand
    return total


def _physical_vmem_bytes():
    try:
        return int(pltpu.get_tpu_info().vmem_capacity_bytes)
    except Exception:
        return 64 << 20   # conservative (v7x-sized) fallback


def _vmem_limit(resident_bytes, phys_bytes):
    cap = int(phys_bytes * 0.85)
    return int(min(max(int(resident_bytes) + (4 << 20), 16 << 20), cap))


# --------------------------------------------------------------------------
# Wrapper
# --------------------------------------------------------------------------
def multi_head_attention(query, key, value, params, num_heads,
                         q_tile=None, kv_tile=512,
                         attn_weights_dtype=jnp.float32):
    """Pallas forward of MultiHeadAttention. Returns (out, attention_weights)."""
    B, Sq, Dq = query.shape
    _, Skv, Dk = key.shape
    _, _, Dvin = value.shape
    Dv = params['wq'].shape[1]
    assert Dv % num_heads == 0, "value_dim must be divisible by num_heads"
    dh = Dv // num_heads
    assert num_heads == 1 or dh % 8 == 0, (
        "head_dim must be a multiple of 8 (sublane) for head-sliced K/V blocks")
    scale = 1.0 / math.sqrt(dh)
    phys_vmem = _physical_vmem_bytes()

    bf16 = jnp.bfloat16
    # One-time wrapper-side layout prep (plain XLA, outside the kernels).
    wkT = params['wk'].T.astype(bf16)                                   # (Dv, Dk)
    wvT = params['wv'].T.astype(bf16)                                   # (Dv, Dvin)
    bkT = params['bk'].reshape(Dv, 1)                                   # (Dv, 1) f32
    bvT = params['bv'].reshape(Dv, 1)                                   # (Dv, 1) f32
    wq_r = params['wq'].reshape(Dq, num_heads, dh).transpose(1, 0, 2).astype(bf16)  # (H, Dq, dh)
    bq_r = params['bq'].reshape(num_heads, 1, dh)                       # (H, 1, dh)
    wo_r = params['wo'].reshape(num_heads, dh, Dv).astype(bf16)         # (H, dh, Dv)
    bo = params['bo']                                                   # (1, Dv)

    # ---------------- Kernel A: head-major K/V projections -----------------
    tkv = _pick_tile(Skv, kv_tile, 128)      # tkv sits on the lane dim of kT/vT
    grid_a = (B, Skv // tkv)
    resident_a = (2 * tkv * (Dk + Dvin) * 4          # input tiles (double-buffered)
                  + 2 * Dv * (Dk + Dvin) * 2         # bf16 weights
                  + 2 * Dv * 4                       # biases
                  + 2 * 2 * Dv * tkv * 2             # bf16 kT/vT output blocks
                  + 2 * Dv * tkv * 4)                # in-kernel f32 temporaries

    k_t, v_t = pl.pallas_call(
        kv_proj_kernel,
        out_shape=(jax.ShapeDtypeStruct((B, Dv, Skv), bf16),
                   jax.ShapeDtypeStruct((B, Dv, Skv), bf16)),
        grid=grid_a,
        in_specs=[
            pl.BlockSpec((1, tkv, Dk), lambda b, j: (b, j, 0)),
            pl.BlockSpec((1, tkv, Dvin), lambda b, j: (b, j, 0)),
            pl.BlockSpec((Dv, Dk), lambda b, j: (0, 0)),
            pl.BlockSpec((Dv, 1), lambda b, j: (0, 0)),
            pl.BlockSpec((Dv, Dvin), lambda b, j: (0, 0)),
            pl.BlockSpec((Dv, 1), lambda b, j: (0, 0)),
        ],
        out_specs=(pl.BlockSpec((1, Dv, tkv), lambda b, j: (b, 0, j)),
                   pl.BlockSpec((1, Dv, tkv), lambda b, j: (b, 0, j))),
        compiler_params=pltpu.CompilerParams(
            dimension_semantics=("parallel", "parallel"),
            vmem_limit_bytes=_vmem_limit(resident_a, phys_vmem)),
    )(key, value, wkT, bkT, wvT, bvT)

    # ---------------- Kernel B: attention over (batch, q-tile, head) -------
    if q_tile is None:
        q_tile = 256 if phys_vmem >= (96 << 20) else 128
    tq = _pick_tile(Sq, q_tile, 8)
    grid_b = (B, Sq // tq, num_heads)

    a_bytes = jnp.dtype(attn_weights_dtype).itemsize
    o_bytes = jnp.dtype(query.dtype).itemsize
    resident_b = (2 * tq * Dq * 4                    # q input block
                  + 2 * 2 * dh * Skv * 2             # per-head kT/vT bf16 blocks
                  + 2 * (Dq * dh + dh * Dv) * 2      # per-head wq/wo bf16 blocks
                  + 2 * dh * 4 + Dv * 4              # biases
                  + 2 * tq * Dv * o_bytes            # output block
                  + 2 * tq * Skv * a_bytes           # attention-weights block
                  + tq * Dv * 4                      # f32 accumulator scratch
                  + 3 * tq * Skv * 4)                # f32 temporaries (logits, p, ...)

    kernel = functools.partial(mha_attn_kernel, scale)
    out, weights = pl.pallas_call(
        kernel,
        out_shape=(jax.ShapeDtypeStruct((B, Sq, Dv), query.dtype),
                   jax.ShapeDtypeStruct((B, num_heads, Sq, Skv), attn_weights_dtype)),
        grid=grid_b,
        in_specs=[
            pl.BlockSpec((1, tq, Dq), lambda b, i, h: (b, i, 0)),
            pl.BlockSpec((1, dh, Skv), lambda b, i, h: (b, h, 0)),
            pl.BlockSpec((1, dh, Skv), lambda b, i, h: (b, h, 0)),
            pl.BlockSpec((1, Dq, dh), lambda b, i, h: (h, 0, 0)),
            pl.BlockSpec((1, 1, dh), lambda b, i, h: (h, 0, 0)),
            pl.BlockSpec((1, dh, Dv), lambda b, i, h: (h, 0, 0)),
            pl.BlockSpec((1, Dv), lambda b, i, h: (0, 0)),
        ],
        out_specs=(pl.BlockSpec((1, tq, Dv), lambda b, i, h: (b, i, 0)),
                   pl.BlockSpec((1, 1, tq, Skv), lambda b, i, h: (b, h, i, 0))),
        scratch_shapes=[pltpu.VMEM((tq, Dv), jnp.float32)],
        compiler_params=pltpu.CompilerParams(
            dimension_semantics=("parallel", "parallel", "arbitrary"),
            vmem_limit_bytes=_vmem_limit(resident_b, phys_vmem)),
    )(query, k_t, v_t, wq_r, bq_r, wo_r, bo)

    return out, weights


# --------------------------------------------------------------------------
# Pure-JAX reference matching the PyTorch forward semantics (f32).
# --------------------------------------------------------------------------
def reference_mha(query, key, value, p, num_heads):
    B, Sq, _ = query.shape
    Skv = key.shape[1]
    Dv = p['wq'].shape[1]
    dh = Dv // num_heads

    q = query @ p['wq'] + p['bq']
    k = key @ p['wk'] + p['bk']
    v = value @ p['wv'] + p['bv']

    def split(t, S):
        return t.reshape(B, S, num_heads, dh).transpose(0, 2, 1, 3)

    qh, kh, vh = split(q, Sq), split(k, Skv), split(v, Skv)
    logits = jnp.einsum('bhqd,bhkd->bhqk', qh, kh) / math.sqrt(dh)
    w = jax.nn.softmax(logits, axis=-1)
    att = jnp.einsum('bhqk,bhkd->bhqd', w, vh)
    att = att.transpose(0, 2, 1, 3).reshape(B, Sq, Dv)
    out = att @ p['wo'] + p['bo']
    return out, w


def init_params(rng, query_dim, key_dim, value_dim):
    ks = jax.random.split(rng, 8)
    f32 = jnp.float32

    def w(k, i, o):
        return jax.random.normal(k, (i, o), f32) * 0.05

    def b(k, o):
        return jax.random.normal(k, (1, o), f32) * 0.01

    return {
        'wq': w(ks[0], query_dim, value_dim), 'bq': b(ks[1], value_dim),
        'wk': w(ks[2], key_dim, value_dim),   'bk': b(ks[3], value_dim),
        'wv': w(ks[4], value_dim, value_dim), 'bv': b(ks[5], value_dim),
        'wo': w(ks[6], value_dim, value_dim), 'bo': b(ks[7], value_dim),
    }


if __name__ == "__main__":
    B, S, D = 2, 8, 32
    NUM_HEADS = 4

    rng = jax.random.PRNGKey(0)
    kq, kk, kv, kp = jax.random.split(rng, 4)
    query = jax.random.normal(kq, (B, S, D), jnp.float32)
    key_in = jax.random.normal(kk, (B, S, D), jnp.float32)
    value_in = jax.random.normal(kv, (B, S, D), jnp.float32)
    params = init_params(kp, D, D, D)

    out, weights = multi_head_attention(query, key_in, value_in, params, NUM_HEADS)
    jax.block_until_ready((out, weights))

    out_ref, w_ref = reference_mha(query, key_in, value_in, params, NUM_HEADS)
    assert out.shape == (B, S, D)
    assert weights.shape == (B, NUM_HEADS, S, S)
    # bf16 MXU operands -> compare with relaxed tolerance.
    assert jnp.allclose(out, out_ref, atol=2e-2, rtol=2e-2)
    assert jnp.allclose(weights, w_ref, atol=2e-2, rtol=2e-2)
    assert jnp.allclose(weights.sum(-1), 1.0, atol=1e-3)

    print("KERNEL_OK")
</pallas_src>

<mosaic_0001>
module attributes {stable_mosaic.version = 11 : i64} {
  func.func @kv_proj_kernel(%arg0: i32, %arg1: i32, %arg2: memref<1x8x32xf32, #tpu.memory_space<vmem>>, %arg3: memref<1x8x32xf32, #tpu.memory_space<vmem>>, %arg4: memref<32x32xbf16, #tpu.memory_space<vmem>>, %arg5: memref<32x1xf32, #tpu.memory_space<vmem>>, %arg6: memref<32x32xbf16, #tpu.memory_space<vmem>>, %arg7: memref<32x1xf32, #tpu.memory_space<vmem>>, %arg8: memref<1x32x8xbf16, #tpu.memory_space<vmem>>, %arg9: memref<1x32x8xbf16, #tpu.memory_space<vmem>>) attributes {dimension_semantics = [#tpu.dimension_semantics<parallel>, #tpu.dimension_semantics<parallel>], iteration_bounds = array<i64: 2, 1>, scalar_prefetch = 0 : i64, scratch_operands = 0 : i64, tpu.core_type = #tpu.core_type<tc>, window_params = [{transform_indices = @transform_0, window_bounds = array<i64: 1, 8, 32>}, {transform_indices = @transform_1, window_bounds = array<i64: 1, 8, 32>}, {pipeline_mode = #tpu.pipeline_mode<synchronous>, transform_indices = @transform_2, window_bounds = array<i64: 32, 32>}, {pipeline_mode = #tpu.pipeline_mode<synchronous>, transform_indices = @transform_3, window_bounds = array<i64: 32, 1>}, {pipeline_mode = #tpu.pipeline_mode<synchronous>, transform_indices = @transform_4, window_bounds = array<i64: 32, 32>}, {pipeline_mode = #tpu.pipeline_mode<synchronous>, transform_indices = @transform_5, window_bounds = array<i64: 32, 1>}, {transform_indices = @transform_6, window_bounds = array<i64: 1, 32, 8>}, {transform_indices = @transform_7, window_bounds = array<i64: 1, 32, 8>}]} {
    %c0 = arith.constant 0 : index
    %c0_0 = arith.constant 0 : index
    %c0_1 = arith.constant 0 : index
    %0 = vector.load %arg2[%c0, %c0_0, %c0_1] : memref<1x8x32xf32, #tpu.memory_space<vmem>>, vector<1x8x32xf32>
    %1 = vector.shape_cast %0 : vector<1x8x32xf32> to vector<8x32xf32>
    %2 = tpu.transpose %1, [1, 0] : vector<8x32xf32> -> vector<32x8xf32>
    %3 = arith.truncf %2 : vector<32x8xf32> to vector<32x8xbf16>
    %c0_2 = arith.constant 0 : index
    %c0_3 = arith.constant 0 : index
    %c0_4 = arith.constant 0 : index
    %4 = vector.load %arg3[%c0_2, %c0_3, %c0_4] : memref<1x8x32xf32, #tpu.memory_space<vmem>>, vector<1x8x32xf32>
    %5 = vector.shape_cast %4 : vector<1x8x32xf32> to vector<8x32xf32>
    %6 = tpu.transpose %5, [1, 0] : vector<8x32xf32> -> vector<32x8xf32>
    %7 = arith.truncf %6 : vector<32x8xf32> to vector<32x8xbf16>
    %c0_5 = arith.constant 0 : index
    %c0_6 = arith.constant 0 : index
    %8 = vector.load %arg4[%c0_5, %c0_6] : memref<32x32xbf16, #tpu.memory_space<vmem>>, vector<32x32xbf16>
    %cst = arith.constant dense<0.000000e+00> : vector<32x8xf32>
    %9 = tpu.matmul %8, %3, %cst {dimension_numbers = #tpu.dot_dimension_numbers<[1], [0], [0], [1], [0, 0, 1, 1], [], []>} : vector<32x32xbf16>, vector<32x8xbf16>, vector<32x8xf32> -> vector<32x8xf32>
    %c0_7 = arith.constant 0 : index
    %c0_8 = arith.constant 0 : index
    %10 = vector.load %arg5[%c0_7, %c0_8] : memref<32x1xf32, #tpu.memory_space<vmem>>, vector<32x1xf32>
    %11 = vector.broadcast %10 : vector<32x1xf32> to vector<32x8xf32>
    %12 = arith.addf %9, %11 : vector<32x8xf32>
    %c0_9 = arith.constant 0 : index
    %c0_10 = arith.constant 0 : index
    %13 = vector.load %arg6[%c0_9, %c0_10] : memref<32x32xbf16, #tpu.memory_space<vmem>>, vector<32x32xbf16>
    %cst_11 = arith.constant dense<0.000000e+00> : vector<32x8xf32>
    %14 = tpu.matmul %13, %7, %cst_11 {dimension_numbers = #tpu.dot_dimension_numbers<[1], [0], [0], [1], [0, 0, 1, 1], [], []>} : vector<32x32xbf16>, vector<32x8xbf16>, vector<32x8xf32> -> vector<32x8xf32>
    %c0_12 = arith.constant 0 : index
    %c0_13 = arith.constant 0 : index
    %15 = vector.load %arg7[%c0_12, %c0_13] : memref<32x1xf32, #tpu.memory_space<vmem>>, vector<32x1xf32>
    %16 = vector.broadcast %15 : vector<32x1xf32> to vector<32x8xf32>
    %17 = arith.addf %14, %16 : vector<32x8xf32>
    %18 = arith.truncf %12 : vector<32x8xf32> to vector<32x8xbf16>
    %c0_14 = arith.constant 0 : index
    %c0_15 = arith.constant 0 : index
    %c0_16 = arith.constant 0 : index
    %19 = vector.load %arg8[%c0_14, %c0_15, %c0_16] : memref<1x32x8xbf16, #tpu.memory_space<vmem>>, vector<1x32x8xbf16>
    %20 = vector.shape_cast %19 : vector<1x32x8xbf16> to vector<32x8xbf16>
    %21 = vector.shape_cast %18 : vector<32x8xbf16> to vector<1x32x8xbf16>
    tpu.vector_store %arg8[%c0_14, %c0_15, %c0_16], %21 {strides = array<i32>} : memref<1x32x8xbf16, #tpu.memory_space<vmem>>, vector<1x32x8xbf16>,
    %22 = arith.truncf %17 : vector<32x8xf32> to vector<32x8xbf16>
    %c0_17 = arith.constant 0 : index
    %c0_18 = arith.constant 0 : index
    %c0_19 = arith.constant 0 : index
    %23 = vector.load %arg9[%c0_17, %c0_18, %c0_19] : memref<1x32x8xbf16, #tpu.memory_space<vmem>>, vector<1x32x8xbf16>
    %24 = vector.shape_cast %23 : vector<1x32x8xbf16> to vector<32x8xbf16>
    %25 = vector.shape_cast %22 : vector<32x8xbf16> to vector<1x32x8xbf16>
    tpu.vector_store %arg9[%c0_17, %c0_18, %c0_19], %25 {strides = array<i32>} : memref<1x32x8xbf16, #tpu.memory_space<vmem>>, vector<1x32x8xbf16>,
    return
  }
  func.func @transform_0(%arg0: i32, %arg1: i32) -> (i32, i32, i32) {
    %c0_i32 = arith.constant 0 : i32
    %c0_i32_0 = arith.constant 0 : i32
    return %arg0, %arg1, %c0_i32 : i32, i32, i32
  }
  func.func @transform_1(%arg0: i32, %arg1: i32) -> (i32, i32, i32) {
    %c0_i32 = arith.constant 0 : i32
    %c0_i32_0 = arith.constant 0 : i32
    return %arg0, %arg1, %c0_i32 : i32, i32, i32
  }
  func.func @transform_2(%arg0: i32, %arg1: i32) -> (i32, i32) {
    %c0_i32 = arith.constant 0 : i32
    %c0_i32_0 = arith.constant 0 : i32
    %c0_i32_1 = arith.constant 0 : i32
    return %c0_i32, %c0_i32_0 : i32, i32
  }
  func.func @transform_3(%arg0: i32, %arg1: i32) -> (i32, i32) {
    %c0_i32 = arith.constant 0 : i32
    %c0_i32_0 = arith.constant 0 : i32
    %c0_i32_1 = arith.constant 0 : i32
    return %c0_i32, %c0_i32_0 : i32, i32
  }
  func.func @transform_4(%arg0: i32, %arg1: i32) -> (i32, i32) {
    %c0_i32 = arith.constant 0 : i32
    %c0_i32_0 = arith.constant 0 : i32
    %c0_i32_1 = arith.constant 0 : i32
    return %c0_i32, %c0_i32_0 : i32, i32
  }
  func.func @transform_5(%arg0: i32, %arg1: i32) -> (i32, i32) {
    %c0_i32 = arith.constant 0 : i32
    %c0_i32_0 = arith.constant 0 : i32
    %c0_i32_1 = arith.constant 0 : i32
    return %c0_i32, %c0_i32_0 : i32, i32
  }
  func.func @transform_6(%arg0: i32, %arg1: i32) -> (i32, i32, i32) {
    %c0_i32 = arith.constant 0 : i32
    %c0_i32_0 = arith.constant 0 : i32
    return %arg0, %c0_i32, %arg1 : i32, i32, i32
  }
  func.func @transform_7(%arg0: i32, %arg1: i32) -> (i32, i32, i32) {
    %c0_i32 = arith.constant 0 : i32
    %c0_i32_0 = arith.constant 0 : i32
    return %arg0, %c0_i32, %arg1 : i32, i32, i32
  }
}

</mosaic_0001>

<llo_original>
// kernel: tpu_custom_call.1
$region0: #{tpu_custom_call.1}
  #allocation0 [shape = 'u32[]', space=smem, size = 0x4, offset = 0x4, fixed_abs, tag = 'smem constant byte address 0x4 - core index']
  #allocation1 [shape = 'u32[72,128]{1,0:T(1,128)}', space=vmem, size = 0x9000, scoped, tag = 'internal scratch']
  %s0 = inlined_call_operand.vmem [shape: f32[2,8,32], index: 0, kind: input, shape index: {}]
  %s1 = inlined_call_operand.vmem [shape: f32[2,8,32], index: 1, kind: input, shape index: {}]
  %s2 = inlined_call_operand.vmem [shape: bf16[32,32], index: 2, kind: input, shape index: {}]
  %s3 = inlined_call_operand.vmem [shape: f32[32,1], index: 3, kind: input, shape index: {}]
  %s4 = inlined_call_operand.vmem [shape: bf16[32,32], index: 4, kind: input, shape index: {}]
  %s5 = inlined_call_operand.vmem [shape: f32[32,1], index: 5, kind: input, shape index: {}]
  %s6 = inlined_call_operand.vmem [shape: bf16[2,32,8], index: 6, kind: output, shape index: {0}]
  %s7 = inlined_call_operand.vmem [shape: bf16[2,32,8], index: 7, kind: output, shape index: {1}]
  %8 = xla_tuple %s6, %s7
  %s9 = sld [smem:[#allocation0]]
  $region65: #{tpu_custom_call.1} parent=0
    _
  %s11 = ssub.s32 1, %s9
  %s12 = scalar_select 0, %s11, %s9
  loop: start=0, step=1, limit=4
  $region2: #{tpu_custom_call.1} parent=0 // loop_pre_header
    _
  $region3: #{tpu_custom_call.1} parent=0 // loop_header
    %s14 = sphi 0, %s18
    %p15 = scmp.ge.s32.totalorder %s14, 4
    %s21 = sphi 0, %s33
    %s22 = sphi 0, %s29
    %s23 = sphi 0, %s21
    %s24 = sphi 0, %s22
    %s25 = sphi 0, %s23
    %s26 = sphi 0, %s24
    %s38 = sphi 0, %s40
    %s41 = sphi 0, %s38
    %s42 = sphi 0, %s41
    %s58 = sphi 0, %s42
    %s66 = sphi 0, %s68
    %s69 = sphi 0, %s66
    %s70 = sphi 0, %s69
    %s86 = sphi 0, %s70
    %s90 = sphi 0, %s90
    %s92 = sphi 0, %s90
    %s93 = sphi 0, %s92
    %s107 = sphi 0, %s93
    %s111 = sphi 0, %s111
    %s113 = sphi 0, %s111
    %s114 = sphi 0, %s113
    %s128 = sphi 0, %s114
    %s132 = sphi 0, %s132
    %s134 = sphi 0, %s132
    %s135 = sphi 0, %s134
    %s149 = sphi 0, %s135
    %s153 = sphi 0, %s153
    %s155 = sphi 0, %s153
    %s156 = sphi 0, %s155
    %s170 = sphi 0, %s156
    %s178 = sphi 0, %s180
    %s181 = sphi 0, %s178
    %s182 = sphi 0, %s181
    %s198 = sphi 0, %s182
    %s206 = sphi 0, %s208
    %s209 = sphi 0, %s206
    %s210 = sphi 0, %s209
    %s226 = sphi 0, %s210
  $region4: #{tpu_custom_call.1} parent=0 // loop_header_branch
    %17 = sbr.rel (%p15) target = $region8
  $region5: #{tpu_custom_call.1} parent=0 // loop_body
    %s19 = ssub.s32 %s14, 1
    %s20 = ssub.s32 %s14, 2
    %s27 = sadd.s32 1, %s22
    %p28 = scmp.ge.s32.totalorder %s27, 1
    %s29 = scalar_select %p28, 0, %s27
    %s30 = sadd.s32 1, %s21
    %s31 = scalar_select %p28, %s30, %s21
    %p32 = scmp.ge.s32.totalorder %s31, 2
    %s33 = scalar_select %p32, 0, %s31
    %s34 = ssub.s32 %s21, %s33
    %s35 = ssub.s32 %s22, %s29
    %s36 = sor.u32 %s34, %s35
    %p37 = scmp.eq.s32.totalorder %s36, 0
    %s39 = sadd.s32 %s38, 1
    %s40 = scalar_select %p37, %s38, %s39
    %p43 = pneg %p37
    %p44 = scmp.eq.s32.totalorder %s14, 1
    %p45 = por %p43, %p44
    %p46 = scmp.ne.s32.totalorder %s38, %s41
    %p47 = scmp.eq.s32.totalorder %s14, 0
    %p48 = por %p46, %p47
    %p49 = scmp.ne.s32.totalorder %s38, %s41
    %p50 = scmp.eq.s32.totalorder %s19, 1
    %p51 = por %p49, %p50
    %p52 = scmp.ne.s32.totalorder %s41, %s42
    %p53 = scmp.eq.s32.totalorder %s19, 0
    %p54 = por %p52, %p53
    %p55 = scmp.ne.s32.totalorder %s41, %s42
    %p56 = scmp.eq.s32.totalorder %s20, 1
    %p57 = por %p55, %p56
    %p59 = scmp.ne.s32.totalorder %s42, %s58
    %p60 = scmp.eq.s32.totalorder %s20, 0
    %p61 = por %p59, %p60
    %s62 = ssub.s32 %s21, %s33
    %s63 = ssub.s32 %s22, %s29
    %s64 = sor.u32 %s62, %s63
    %p65 = scmp.eq.s32.totalorder %s64, 0
    %s67 = sadd.s32 %s66, 1
    %s68 = scalar_select %p65, %s66, %s67
    %p71 = pneg %p65
    %p72 = scmp.eq.s32.totalorder %s14, 1
    %p73 = por %p71, %p72
    %p74 = scmp.ne.s32.totalorder %s66, %s69
    %p75 = scmp.eq.s32.totalorder %s14, 0
    %p76 = por %p74, %p75
    %p77 = scmp.ne.s32.totalorder %s66, %s69
    %p78 = scmp.eq.s32.totalorder %s19, 1
    %p79 = por %p77, %p78
    %p80 = scmp.ne.s32.totalorder %s69, %s70
    %p81 = scmp.eq.s32.totalorder %s19, 0
    %p82 = por %p80, %p81
    %p83 = scmp.ne.s32.totalorder %s69, %s70
    %p84 = scmp.eq.s32.totalorder %s20, 1
    %p85 = por %p83, %p84
    %p87 = scmp.ne.s32.totalorder %s70, %s86
    %p88 = scmp.eq.s32.totalorder %s20, 0
    %p89 = por %p87, %p88
    %s91 = sadd.s32 %s90, 1
    %p94 = scmp.eq.s32.totalorder %s14, 1
    %p95 = scmp.ne.s32.totalorder %s90, %s92
    %p96 = scmp.eq.s32.totalorder %s14, 0
    %p97 = por %p95, %p96
    %p98 = scmp.ne.s32.totalorder %s90, %s92
    %p99 = scmp.eq.s32.totalorder %s19, 1
    %p100 = por %p98, %p99
    %p101 = scmp.ne.s32.totalorder %s92, %s93
    %p102 = scmp.eq.s32.totalorder %s19, 0
    %p103 = por %p101, %p102
    %p104 = scmp.ne.s32.totalorder %s92, %s93
    %p105 = scmp.eq.s32.totalorder %s20, 1
    %p106 = por %p104, %p105
    %p108 = scmp.ne.s32.totalorder %s93, %s107
    %p109 = scmp.eq.s32.totalorder %s20, 0
    %p110 = por %p108, %p109
    %s112 = sadd.s32 %s111, 1
    %p115 = scmp.eq.s32.totalorder %s14, 1
    %p116 = scmp.ne.s32.totalorder %s111, %s113
    %p117 = scmp.eq.s32.totalorder %s14, 0
    %p118 = por %p116, %p117
    %p119 = scmp.ne.s32.totalorder %s111, %s113
    %p120 = scmp.eq.s32.totalorder %s19, 1
    %p121 = por %p119, %p120
    %p122 = scmp.ne.s32.totalorder %s113, %s114
    %p123 = scmp.eq.s32.totalorder %s19, 0
    %p124 = por %p122, %p123
    %p125 = scmp.ne.s32.totalorder %s113, %s114
    %p126 = scmp.eq.s32.totalorder %s20, 1
    %p127 = por %p125, %p126
    %p129 = scmp.ne.s32.totalorder %s114, %s128
    %p130 = scmp.eq.s32.totalorder %s20, 0
    %p131 = por %p129, %p130
    %s133 = sadd.s32 %s132, 1
    %p136 = scmp.eq.s32.totalorder %s14, 1
    %p137 = scmp.ne.s32.totalorder %s132, %s134
    %p138 = scmp.eq.s32.totalorder %s14, 0
    %p139 = por %p137, %p138
    %p140 = scmp.ne.s32.totalorder %s132, %s134
    %p141 = scmp.eq.s32.totalorder %s19, 1
    %p142 = por %p140, %p141
    %p143 = scmp.ne.s32.totalorder %s134, %s135
    %p144 = scmp.eq.s32.totalorder %s19, 0
    %p145 = por %p143, %p144
    %p146 = scmp.ne.s32.totalorder %s134, %s135
    %p147 = scmp.eq.s32.totalorder %s20, 1
    %p148 = por %p146, %p147
    %p150 = scmp.ne.s32.totalorder %s135, %s149
    %p151 = scmp.eq.s32.totalorder %s20, 0
    %p152 = por %p150, %p151
    %s154 = sadd.s32 %s153, 1
    %p157 = scmp.eq.s32.totalorder %s14, 1
    %p158 = scmp.ne.s32.totalorder %s153, %s155
    %p159 = scmp.eq.s32.totalorder %s14, 0
    %p160 = por %p158, %p159
    %p161 = scmp.ne.s32.totalorder %s153, %s155
    %p162 = scmp.eq.s32.totalorder %s19, 1
    %p163 = por %p161, %p162
    %p164 = scmp.ne.s32.totalorder %s155, %s156
    %p165 = scmp.eq.s32.totalorder %s19, 0
    %p166 = por %p164, %p165
    %p167 = scmp.ne.s32.totalorder %s155, %s156
    %p168 = scmp.eq.s32.totalorder %s20, 1
    %p169 = por %p167, %p168
    %p171 = scmp.ne.s32.totalorder %s156, %s170
    %p172 = scmp.eq.s32.totalorder %s20, 0
    %p173 = por %p171, %p172
    %s174 = ssub.s32 %s21, %s33
    %s175 = ssub.s32 %s22, %s29
    %s176 = sor.u32 %s174, %s175
    %p177 = scmp.eq.s32.totalorder %s176, 0
    %s179 = sadd.s32 %s178, 1
    %s180 = scalar_select %p177, %s178, %s179
    %p183 = pneg %p177
    %p184 = scmp.eq.s32.totalorder %s14, 1
    %p185 = por %p183, %p184
    %p186 = scmp.ne.s32.totalorder %s178, %s181
    %p187 = scmp.eq.s32.totalorder %s14, 0
    %p188 = por %p186, %p187
    %p189 = scmp.ne.s32.totalorder %s178, %s181
    %p190 = scmp.eq.s32.totalorder %s19, 1
    %p191 = por %p189, %p190
    %p192 = scmp.ne.s32.totalorder %s181, %s182
    %p193 = scmp.eq.s32.totalorder %s19, 0
    %p194 = por %p192, %p193
    %p195 = scmp.ne.s32.totalorder %s181, %s182
    %p196 = scmp.eq.s32.totalorder %s20, 1
    %p197 = por %p195, %p196
    %p199 = scmp.ne.s32.totalorder %s182, %s198
    %p200 = scmp.eq.s32.totalorder %s20, 0
    %p201 = por %p199, %p200
    %s202 = ssub.s32 %s21, %s33
    %s203 = ssub.s32 %s22, %s29
    %s204 = sor.u32 %s202, %s203
    %p205 = scmp.eq.s32.totalorder %s204, 0
    %s207 = sadd.s32 %s206, 1
    %s208 = scalar_select %p205, %s206, %s207
    %p211 = pneg %p205
    %p212 = scmp.eq.s32.totalorder %s14, 1
    %p213 = por %p211, %p212
    %p214 = scmp.ne.s32.totalorder %s206, %s209
    %p215 = scmp.eq.s32.totalorder %s14, 0
    %p216 = por %p214, %p215
    %p217 = scmp.ne.s32.totalorder %s206, %s209
    %p218 = scmp.eq.s32.totalorder %s19, 1
    %p219 = por %p217, %p218
    %p220 = scmp.ne.s32.totalorder %s209, %s210
    %p221 = scmp.eq.s32.totalorder %s19, 0
    %p222 = por %p220, %p221
    %p223 = scmp.ne.s32.totalorder %s209, %s210
    %p224 = scmp.eq.s32.totalorder %s20, 1
    %p225 = por %p223, %p224
    %p227 = scmp.ne.s32.totalorder %s210, %s226
    %p228 = scmp.eq.s32.totalorder %s20, 0
    %p229 = por %p227, %p228
    %p230 = scmp.le.s32.totalorder 1, %s14
    %p231 = scmp.lt.s32.totalorder %s14, 3
    %p232 = pnand %p230, %p231
    %p233 = pneg %p232
    // Predicated region
    $region9: #{tpu_custom_call.1} parent=5 // pred_check
      _
    $region10: #{tpu_custom_call.1} parent=5 // pred_check_branch
      %235 = sbr.rel (%p232) target = $region12
    $region11: #{tpu_custom_call.1} parent=5 // pred_region
      %s236 = ssub.s32 %s14, 1
      // Predicated region
      $region13: #{tpu_custom_call.1} parent=11 // pred_check
        %p237 = pneg %p103
      $region14: #{tpu_custom_call.1} parent=11 // pred_check_branch
        %239 = sbr.rel (%p237) target = $region16
      $region15: #{tpu_custom_call.1} parent=11 // pred_region
        _
      $region16: #{tpu_custom_call.1} parent=11 // pred_fallthru
        _
      // Predicated region
      $region17: #{tpu_custom_call.1} parent=11 // pred_check
        %p240 = pneg %p124
      $region18: #{tpu_custom_call.1} parent=11 // pred_check_branch
        %242 = sbr.rel (%p240) target = $region20
      $region19: #{tpu_custom_call.1} parent=11 // pred_region
        _
      $region20: #{tpu_custom_call.1} parent=11 // pred_fallthru
        _
      // Predicated region
      $region21: #{tpu_custom_call.1} parent=11 // pred_check
        %p243 = pneg %p145
      $region22: #{tpu_custom_call.1} parent=11 // pred_check_branch
        %245 = sbr.rel (%p243) target = $region24
      $region23: #{tpu_custom_call.1} parent=11 // pred_region
        _
      $region24: #{tpu_custom_call.1} parent=11 // pred_fallthru
        _
      // Predicated region
      $region25: #{tpu_custom_call.1} parent=11 // pred_check
        %p246 = pneg %p166
      $region26: #{tpu_custom_call.1} parent=11 // pred_check_branch
        %248 = sbr.rel (%p246) target = $region28
      $region27: #{tpu_custom_call.1} parent=11 // pred_region
        _
      $region28: #{tpu_custom_call.1} parent=11 // pred_fallthru
        _
    $region12: #{tpu_custom_call.1} parent=5 // pred_fallthru
      _
    %p249 = scmp.lt.s32.totalorder %s14, 2
    // Predicated region
    $region29: #{tpu_custom_call.1} parent=5 // pred_check
      %p250 = pneg %p249
    $region30: #{tpu_custom_call.1} parent=5 // pred_check_branch
      %252 = sbr.rel (%p250) target = $region32
    $region31: #{tpu_custom_call.1} parent=5 // pred_region
      // Predicated region
      $region33: #{tpu_custom_call.1} parent=31 // pred_check
        %p253 = pneg %p48
      $region34: #{tpu_custom_call.1} parent=31 // pred_check_branch
        %255 = sbr.rel (%p253) target = $region36
      $region35: #{tpu_custom_call.1} parent=31 // pred_region
        %p256 = scmp.lt.s32.totalorder %s21, 1
        %s257 = scalar_select %p256, %s21, 1
        %p258 = scmp.lt.s32.totalorder %s22, 0
        %s259 = scalar_select %p258, %s22, 0
        %s260 = sadd.s32 %s259, %s257
        %s261 = smul.addr %s260, 8
        %s262 = scalar_lea.vmem %s0, %s261
      $region36: #{tpu_custom_call.1} parent=31 // pred_fallthru
        _
      // Predicated region
      $region37: #{tpu_custom_call.1} parent=31 // pred_check
        %p263 = pneg %p76
      $region38: #{tpu_custom_call.1} parent=31 // pred_check_branch
        %265 = sbr.rel (%p263) target = $region40
      $region39: #{tpu_custom_call.1} parent=31 // pred_region
        %p266 = scmp.lt.s32.totalorder %s21, 1
        %s267 = scalar_select %p266, %s21, 1
        %p268 = scmp.lt.s32.totalorder %s22, 0
        %s269 = scalar_select %p268, %s22, 0
        %s270 = sadd.s32 %s269, %s267
        %s271 = smul.addr %s270, 8
        %s272 = scalar_lea.vmem %s1, %s271
      $region40: #{tpu_custom_call.1} parent=31 // pred_fallthru
        _
    $region32: #{tpu_custom_call.1} parent=5 // pred_fallthru
      _
    %p273 = scmp.le.s32.totalorder 1, %s14
    %p274 = scmp.lt.s32.totalorder %s14, 3
    %p275 = pnand %p273, %p274
    %p276 = pneg %p275
    // Predicated region
    $region41: #{tpu_custom_call.1} parent=5 // pred_check
      _
    $region42: #{tpu_custom_call.1} parent=5 // pred_check_branch
      %278 = sbr.rel (%p275) target = $region44
    $region43: #{tpu_custom_call.1} parent=5 // pred_region
      %s279 = ssub.s32 %s14, 1
      %p280 = scmp.lt.s32.totalorder %s23, 1
      %s281 = scalar_select %p280, %s23, 1
      %p282 = scmp.lt.s32.totalorder %s24, 0
      %s283 = scalar_select %p282, %s24, 0
      %s284 = sadd.s32 %s283, %s281
      %s285 = smul.addr %s284, 8
      %s286 = scalar_lea.vmem %s0, %s285
      %p287 = pneg %p54
      %p288 = pneg %p51
      %p289 = scmp.lt.s32.totalorder %s23, 1
      %s290 = scalar_select %p289, %s23, 1
      %p291 = scmp.lt.s32.totalorder %s24, 0
      %s292 = scalar_select %p291, %s24, 0
      %s293 = sadd.s32 %s292, %s290
      %s294 = smul.addr %s293, 8
      %s295 = scalar_lea.vmem %s1, %s294
      %p296 = pneg %p82
      %p297 = pneg %p79
      %p298 = pneg %p103
      %p299 = pneg %p100
      %p300 = pneg %p124
      %p301 = pneg %p121
      %p302 = pneg %p145
      %p303 = pneg %p142
      %p304 = pneg %p166
      %p305 = pneg %p163
      %p306 = pneg %p194
      %p307 = pneg %p191
      %p308 = scmp.lt.s32.totalorder %s23, 1
      %s309 = scalar_select %p308, %s23, 1
      %p310 = scmp.lt.s32.totalorder %s24, 0
      %s311 = scalar_select %p310, %s24, 0
      %s312 = smul.addr %s309, 4
      %s313 = sadd.s32 %s311, %s312
      %s314 = smul.addr %s313, 4
      %s315 = scalar_lea.vmem %s6, %s314
      %p316 = pneg %p222
      %p317 = pneg %p219
      %p318 = scmp.lt.s32.totalorder %s23, 1
      %s319 = scalar_select %p318, %s23, 1
      %p320 = scmp.lt.s32.totalorder %s24, 0
      %s321 = scalar_select %p320, %s24, 0
      %s322 = smul.addr %s319, 4
      %s323 = sadd.s32 %s321, %s322
      %s324 = smul.addr %s323, 4
      %s325 = scalar_lea.vmem %s7, %s324
      %p326 = scmp.lt.s32.totalorder %s23, 1
      %s327 = scalar_select %p326, %s23, 1
      %p328 = scmp.lt.s32.totalorder %s24, 0
      %s329 = scalar_select %p328, %s24, 0
      %s330 = sadd.s32 %s329, %s327
      %s331 = smul.addr %s330, 8
      %s332 = scalar_lea.vmem %s0, %s331
      %p333 = scmp.lt.s32.totalorder %s23, 1
      %s334 = scalar_select %p333, %s23, 1
      %p335 = scmp.lt.s32.totalorder %s24, 0
      %s336 = scalar_select %p335, %s24, 0
      %s337 = sadd.s32 %s336, %s334
      %s338 = smul.addr %s337, 8
      %s339 = scalar_lea.vmem %s1, %s338
      %p340 = scmp.lt.s32.totalorder %s23, 1
      %s341 = scalar_select %p340, %s23, 1
      %p342 = scmp.lt.s32.totalorder %s24, 0
      %s343 = scalar_select %p342, %s24, 0
      %s344 = smul.addr %s341, 4
      %s345 = sadd.s32 %s343, %s344
      %s346 = smul.addr %s345, 4
      %s347 = scalar_lea.vmem %s6, %s346
      %p348 = scmp.lt.s32.totalorder %s23, 1
      %s349 = scalar_select %p348, %s23, 1
      %p350 = scmp.lt.s32.totalorder %s24, 0
      %s351 = scalar_select %p350, %s24, 0
      %s352 = smul.addr %s349, 4
      %s353 = sadd.s32 %s351, %s352
      %s354 = smul.addr %s353, 4
      %s355 = scalar_lea.vmem %s7, %s354
      %v357 = vld [vmem:[%s332] sm:$0xff]
      %358 = vxpose.xlu0.b32.start [1/16] %v357, 128
      %359 = vxpose.xlu0.b32.cont [2/16] 0.0, 128
      %360 = vxpose.xlu0.b32.cont [3/16] 0.0, 128
      %361 = vxpose.xlu0.b32.cont [4/16] 0.0, 128
      %362 = vxpose.xlu0.b32.cont [5/16] 0.0, 128
      %363 = vxpose.xlu0.b32.cont [6/16] 0.0, 128
      %364 = vxpose.xlu0.b32.cont [7/16] 0.0, 128
      %365 = vxpose.xlu0.b32.cont [8/16] 0.0, 128
      %366 = vxpose.xlu0.b32.cont [9/16] 0.0, 128
      %367 = vxpose.xlu0.b32.cont [10/16] 0.0, 128
      %368 = vxpose.xlu0.b32.cont [11/16] 0.0, 128
      %369 = vxpose.xlu0.b32.cont [12/16] 0.0, 128
      %370 = vxpose.xlu0.b32.cont [13/16] 0.0, 128
      %371 = vxpose.xlu0.b32.cont [14/16] 0.0, 128
      %372 = vxpose.xlu0.b32.cont [15/16] 0.0, 128
      %373 = vxpose.xlu0.b32.end [16/16] 0.0, 128
      %v374 = vpop.trf.xlu0
      %v375 = vpop.trf.xlu0
      %v376 = vpop.trf.xlu0
      %v377 = vpop.trf.xlu0
      %v378 = vpop.trf.xlu0
      %v379 = vpop.trf.xlu0
      %v380 = vpop.trf.xlu0
      %v381 = vpop.trf.xlu0
      %v382 = vpop.trf.xlu0
      %v383 = vpop.trf.xlu0
      %v384 = vpop.trf.xlu0
      %v385 = vpop.trf.xlu0
      %v386 = vpop.trf.xlu0
      %v387 = vpop.trf.xlu0
      %v388 = vpop.trf.xlu0
      %v389 = vpop.trf.xlu0
      %v390 = vpack.c.bf16 %v375, %v374
      %v391 = vpack.c.bf16 %v377, %v376
      %v392 = vld [vmem:[%s339] sm:$0xff]
      %393 = vxpose.xlu0.b32.start [1/16] %v392, 128
      %394 = vxpose.xlu0.b32.cont [2/16] 0.0, 128
      %395 = vxpose.xlu0.b32.cont [3/16] 0.0, 128
      %396 = vxpose.xlu0.b32.cont [4/16] 0.0, 128
      %397 = vxpose.xlu0.b32.cont [5/16] 0.0, 128
      %398 = vxpose.xlu0.b32.cont [6/16] 0.0, 128
      %399 = vxpose.xlu0.b32.cont [7/16] 0.0, 128
      %400 = vxpose.xlu0.b32.cont [8/16] 0.0, 128
      %401 = vxpose.xlu0.b32.cont [9/16] 0.0, 128
      %402 = vxpose.xlu0.b32.cont [10/16] 0.0, 128
      %403 = vxpose.xlu0.b32.cont [11/16] 0.0, 128
      %404 = vxpose.xlu0.b32.cont [12/16] 0.0, 128
      %405 = vxpose.xlu0.b32.cont [13/16] 0.0, 128
      %406 = vxpose.xlu0.b32.cont [14/16] 0.0, 128
      %407 = vxpose.xlu0.b32.cont [15/16] 0.0, 128
      %408 = vxpose.xlu0.b32.end [16/16] 0.0, 128
      %v409 = vpop.trf.xlu0
      %v410 = vpop.trf.xlu0
      %v411 = vpop.trf.xlu0
      %v412 = vpop.trf.xlu0
      %v413 = vpop.trf.xlu0
      %v414 = vpop.trf.xlu0
      %v415 = vpop.trf.xlu0
      %v416 = vpop.trf.xlu0
      %v417 = vpop.trf.xlu0
      %v418 = vpop.trf.xlu0
      %v419 = vpop.trf.xlu0
      %v420 = vpop.trf.xlu0
      %v421 = vpop.trf.xlu0
      %v422 = vpop.trf.xlu0
      %v423 = vpop.trf.xlu0
      %v424 = vpop.trf.xlu0
      %v425 = vpack.c.bf16 %v410, %v409
      %v426 = vpack.c.bf16 %v412, %v411
      %v427 = vld [vmem:[%s2] sm:$0xf]
      %v428 = vld [vmem:[%s2 + $0x4] sm:$0xf]
      %v429 = vld [vmem:[%s2 + $0x8] sm:$0xf]
      %v430 = vld [vmem:[%s2 + $0xc] sm:$0xf]
      %v431 = vld [vmem:[%s3] sm:$0xff]
      %v432 = vld [vmem:[%s3 + $0x8] sm:$0xff]
      %v433 = vld [vmem:[%s3 + $0x10] sm:$0xff]
      %v434 = vld [vmem:[%s3 + $0x18] sm:$0xff]
      %436 = vset.pattern.permute.xlu0 0
      %437 = vperm.xlu0 %436, %v431
      %v438 = vpop.permute.xlu0 %437
      %441 = vset.pattern.permute.xlu0 0
      %442 = vperm.xlu0 %441, %v432
      %v443 = vpop.permute.xlu0 %442
      %446 = vset.pattern.permute.xlu0 0
      %447 = vperm.xlu0 %446, %v433
      %v448 = vpop.permute.xlu0 %447
      %451 = vset.pattern.permute.xlu0 0
      %452 = vperm.xlu0 %451, %v434
      %v453 = vpop.permute.xlu0 %452
      %v459 = vunpack.c.l.b16 %v427
      %v460 = vunpack.c.l.b16 %v428
      %v461 = vunpack.c.l.b16 %v429
      %v462 = vunpack.c.l.b16 %v430
      %v463 = vpack.c.b16 %v460, %v459
      %v464 = vpack.c.b16 %v462, %v461
      %vm465 = vcmask 261120
      %v467 = vsel %vm465, %v463, 0
      %v470 = vsel %vm465, %v464, 0
      %472 = vmatpush.bf16.msra.mxu0 0
      %473 = vmatpush.bf16.msra.mxu0 0
      %474 = vmatpush.bf16.msra.mxu0 0
      %475 = vmatpush.bf16.msra.mxu0 0
      %476 = vmatpush.bf16.msra.mxu0 0
      %477 = vmatpush.bf16.msra.mxu0 0
      %478 = vmatpush.bf16.msra.mxu0 %v391
      %479 = vmatpush.bf16.msra.mxu0 %v390
      %480 = vmatmul.bf16.gmra.mxu0 %v467
      %v481 = vpop.f32.mrf.mxu0
      %v482 = vadd.f32 %v438, %v481
      %v483 = vpop.f32.mrf.mxu0
      %v484 = vadd.f32 %v443, %v483
      %485 = vmatmul.bf16.gmra.mxu0 %v470
      %v486 = vpop.f32.mrf.mxu0
      %v487 = vadd.f32 %v448, %v486
      %v488 = vpop.f32.mrf.mxu0
      %v489 = vadd.f32 %v453, %v488
      %490 = vdwg.mxu0
      %v491 = vld [vmem:[%s4] sm:$0xf]
      %v492 = vld [vmem:[%s4 + $0x4] sm:$0xf]
      %v493 = vld [vmem:[%s4 + $0x8] sm:$0xf]
      %v494 = vld [vmem:[%s4 + $0xc] sm:$0xf]
      %v495 = vld [vmem:[%s5] sm:$0xff]
      %v496 = vld [vmem:[%s5 + $0x8] sm:$0xff]
      %v497 = vld [vmem:[%s5 + $0x10] sm:$0xff]
      %v498 = vld [vmem:[%s5 + $0x18] sm:$0xff]
      %500 = vset.pattern.permute.xlu0 0
      %501 = vperm.xlu0 %500, %v495
      %v502 = vpop.permute.xlu0 %501
      %505 = vset.pattern.permute.xlu0 0
      %506 = vperm.xlu0 %505, %v496
      %v507 = vpop.permute.xlu0 %506
      %510 = vset.pattern.permute.xlu0 0
      %511 = vperm.xlu0 %510, %v497
      %v512 = vpop.permute.xlu0 %511
      %515 = vset.pattern.permute.xlu0 0
      %516 = vperm.xlu0 %515, %v498
      %v517 = vpop.permute.xlu0 %516
      %v523 = vunpack.c.l.b16 %v491
      %v524 = vunpack.c.l.b16 %v492
      %v525 = vunpack.c.l.b16 %v493
      %v526 = vunpack.c.l.b16 %v494
      %v527 = vpack.c.b16 %v524, %v523
      %v528 = vpack.c.b16 %v526, %v525
      %v530 = vsel %vm465, %v527, 0
      %v533 = vsel %vm465, %v528, 0
      %535 = vmatpush.bf16.msra.mxu0 0
      %536 = vmatpush.bf16.msra.mxu0 0
      %537 = vmatpush.bf16.msra.mxu0 0
      %538 = vmatpush.bf16.msra.mxu0 0
      %539 = vmatpush.bf16.msra.mxu0 0
      %540 = vmatpush.bf16.msra.mxu0 0
      %541 = vmatpush.bf16.msra.mxu0 %v426
      %542 = vmatpush.bf16.msra.mxu0 %v425
      %543 = vmatmul.bf16.gmra.mxu0 %v530
      %v544 = vpop.f32.mrf.mxu0
      %v545 = vadd.f32 %v502, %v544
      %v546 = vpop.f32.mrf.mxu0
      %v547 = vadd.f32 %v507, %v546
      %548 = vmatmul.bf16.gmra.mxu0 %v533
      %v549 = vpop.f32.mrf.mxu0
      %v550 = vadd.f32 %v512, %v549
      %v551 = vpop.f32.mrf.mxu0
      %v552 = vadd.f32 %v517, %v551
      %553 = vdwg.mxu0
      %v554 = vpack.c.bf16 %v482, %v482
      %v555 = vpack.c.bf16 %v484, %v484
      %v556 = vpack.c.bf16 %v487, %v487
      %v557 = vpack.c.bf16 %v489, %v489
      %vm558 = vcmask 60416
      %559 = vst.msk [vmem:[%s347] sm:$0xf] %vm558, %v554
      %560 = vst.msk [vmem:[%s347 + $0x4] sm:$0xf] %vm558, %v555
      %561 = vst.msk [vmem:[%s347 + $0x8] sm:$0xf] %vm558, %v556
      %562 = vst.msk [vmem:[%s347 + $0xc] sm:$0xf] %vm558, %v557
      %v563 = vpack.c.bf16 %v545, %v545
      %v564 = vpack.c.bf16 %v547, %v547
      %v565 = vpack.c.bf16 %v550, %v550
      %v566 = vpack.c.bf16 %v552, %v552
      %567 = vst.msk [vmem:[%s355] sm:$0xf] %vm558, %v563
      %568 = vst.msk [vmem:[%s355 + $0x4] sm:$0xf] %vm558, %v564
      %569 = vst.msk [vmem:[%s355 + $0x8] sm:$0xf] %vm558, %v565
      %570 = vst.msk [vmem:[%s355 + $0xc] sm:$0xf] %vm558, %v566
      %p571 = scmp.lt.s32.totalorder %s23, 1
      %s572 = scalar_select %p571, %s23, 1
      %p573 = scmp.lt.s32.totalorder %s24, 0
      %s574 = scalar_select %p573, %s24, 0
      %s575 = smul.addr %s572, 4
      %s576 = sadd.s32 %s574, %s575
      %s577 = smul.addr %s576, 4
      %s578 = scalar_lea.vmem %s6, %s577
      %p579 = scmp.lt.s32.totalorder %s23, 1
      %s580 = scalar_select %p579, %s23, 1
      %p581 = scmp.lt.s32.totalorder %s24, 0
      %s582 = scalar_select %p581, %s24, 0
      %s583 = smul.addr %s580, 4
      %s584 = sadd.s32 %s582, %s583
      %s585 = smul.addr %s584, 4
      %s586 = scalar_lea.vmem %s7, %s585
      // Predicated region
      $region45: #{tpu_custom_call.1} parent=43 // pred_check
        %p587 = pneg %p191
      $region46: #{tpu_custom_call.1} parent=43 // pred_check_branch
        %589 = sbr.rel (%p587) target = $region48
      $region47: #{tpu_custom_call.1} parent=43 // pred_region
        _
      $region48: #{tpu_custom_call.1} parent=43 // pred_fallthru
        _
      // Predicated region
      $region49: #{tpu_custom_call.1} parent=43 // pred_check
        %p590 = pneg %p219
      $region50: #{tpu_custom_call.1} parent=43 // pred_check_branch
        %592 = sbr.rel (%p590) target = $region52
      $region51: #{tpu_custom_call.1} parent=43 // pred_region
        _
      $region52: #{tpu_custom_call.1} parent=43 // pred_fallthru
        _
    $region44: #{tpu_custom_call.1} parent=5 // pred_fallthru
      _
    %p593 = scmp.le.s32.totalorder 2, %s14
    // Predicated region
    $region53: #{tpu_custom_call.1} parent=5 // pred_check
      %p594 = pneg %p593
    $region54: #{tpu_custom_call.1} parent=5 // pred_check_branch
      %596 = sbr.rel (%p594) target = $region56
    $region55: #{tpu_custom_call.1} parent=5 // pred_region
      %s597 = ssub.s32 %s14, 2
      // Predicated region
      $region57: #{tpu_custom_call.1} parent=55 // pred_check
        %p598 = pneg %p197
      $region58: #{tpu_custom_call.1} parent=55 // pred_check_branch
        %600 = sbr.rel (%p598) target = $region60
      $region59: #{tpu_custom_call.1} parent=55 // pred_region
        %p601 = scmp.lt.s32.totalorder %s25, 1
        %s602 = scalar_select %p601, %s25, 1
        %p603 = scmp.lt.s32.totalorder %s26, 0
        %s604 = scalar_select %p603, %s26, 0
        %s605 = smul.addr %s602, 4
        %s606 = sadd.s32 %s604, %s605
        %s607 = smul.addr %s606, 4
        %s608 = scalar_lea.vmem %s6, %s607
      $region60: #{tpu_custom_call.1} parent=55 // pred_fallthru
        _
      // Predicated region
      $region61: #{tpu_custom_call.1} parent=55 // pred_check
        %p609 = pneg %p225
      $region62: #{tpu_custom_call.1} parent=55 // pred_check_branch
        %611 = sbr.rel (%p609) target = $region64
      $region63: #{tpu_custom_call.1} parent=55 // pred_region
        %p612 = scmp.lt.s32.totalorder %s25, 1
        %s613 = scalar_select %p612, %s25, 1
        %p614 = scmp.lt.s32.totalorder %s26, 0
        %s615 = scalar_select %p614, %s26, 0
        %s616 = smul.addr %s613, 4
        %s617 = sadd.s32 %s615, %s616
        %s618 = smul.addr %s617, 4
        %s619 = scalar_lea.vmem %s7, %s618
      $region64: #{tpu_custom_call.1} parent=55 // pred_fallthru
        _
    $region56: #{tpu_custom_call.1} parent=5 // pred_fallthru
      _
  $region6: #{tpu_custom_call.1} parent=0 // loop_footer
    %s18 = sadd.s32 1, %s14
  $region7: #{tpu_custom_call.1} parent=0 // loop_footer_branch
    %13 = sbr.rel target = $region3
  $region8: #{tpu_custom_call.1} parent=0 // loop_exit
    _

</llo_original>
